<compile_context>
chip_gen: v7x
topology: tpu7x:2x2x1
jax: 0.10.0
libtpu: 0.0.40
codegen_flags: <defaults>
</compile_context>

<pallas_src>
import functools

import jax
import jax.numpy as jnp
from jax import lax
from jax.experimental import pallas as pl
from jax.experimental.pallas import tpu as pltpu


def _controller_kernel(h_ref, w_ref, b_ref, u_ref, out_ref, *, decade, eps):
    # Linear: z = h @ W + b   (MXU matmul, f32 accumulation)
    z = jnp.dot(h_ref[...], w_ref[...], preferred_element_type=jnp.float32)
    z = z + b_ref[...]

    # probs = sigmoid(-decade * z); constant multiply (VPU), no divide.
    a = z * jnp.float32(-decade)
    e = jnp.exp(-a)                      # single shared transcendental
    probs = 1.0 / (1.0 + e)              # sigmoid(a)

    if eps == 0.0:
        # Numerically stable logs sharing the same exp:
        #   -log(p)   = log1p(e)
        #    log(1-p) = -a - log1p(e)
        nlogp = jnp.log1p(e)
        log_p = -nlogp
        log_1mp = -a - nlogp
    else:
        # eps-mixing bounds probs away from {0,1}; direct logs are safe.
        probs = (1.0 - eps) * probs + 0.5 * eps
        log_p = jnp.log(probs)
        nlogp = -log_p
        log_1mp = jnp.log1p(-probs)

    # Bernoulli sample with externally supplied U(0,1) noise.
    take = u_ref[...] < probs
    halt = take.astype(jnp.float32)
    # Bernoulli log_prob of the sample.
    log_pi = jnp.where(take, log_p, log_1mp)

    # Single lane-dense fused output: [halt | log_pi | -log(probs) | probs]
    out_ref[...] = jnp.concatenate([halt, log_pi, nlogp, probs], axis=-1)


def controller_forward(h_t, w, b, key, decade=2.0, eps=0.0):
    """Pallas forward of ControllerCPU.

    h_t: (B, input_size) or (T, B, input_size) float32.  A time axis lets one
         pallas_call amortize many controller steps (grid over T).
    w:   (input_size, output_size) float32  -- transposed vs torch Linear.weight.
    b:   (output_size,) float32
    key: jax PRNG key for the Bernoulli sampling noise.
    Returns (halt, log_pi, -log(probs), probs), each (..., output_size).
    """
    squeeze_t = (h_t.ndim == 2)
    if squeeze_t:
        h_t = h_t[None]
    T, B, K = h_t.shape
    N = w.shape[-1]

    h_t = h_t.astype(jnp.float32)
    w = w.astype(jnp.float32)
    b2 = jnp.asarray(b, jnp.float32).reshape(1, N)
    # One uniform draw per (step, batch, unit) -> unique noise per grid step.
    u = jax.random.uniform(key, (T, B, N), jnp.float32)

    kernel = functools.partial(_controller_kernel,
                               decade=float(decade), eps=float(eps))

    extra = {}
    if jax.default_backend() == "tpu":
        extra["compiler_params"] = pltpu.CompilerParams(
            dimension_semantics=("parallel",))  # shard timesteps across TCs (v7x)
        extra["cost_estimate"] = pl.CostEstimate(
            flops=2 * T * B * K * N,
            transcendentals=2 * T * B * N,
            bytes_accessed=4 * (T * B * K + K * N + N + T * B * N + T * B * 4 * N))

    out = pl.pallas_call(
        kernel,
        out_shape=jax.ShapeDtypeStruct((T, B, 4 * N), jnp.float32),
        grid=(T,),
        in_specs=[
            pl.BlockSpec((None, B, K), lambda t: (t, 0, 0)),   # h_t, per step
            pl.BlockSpec((K, N), lambda t: (0, 0)),            # W (resident)
            pl.BlockSpec((1, N), lambda t: (0, 0)),            # bias (resident)
            pl.BlockSpec((None, B, N), lambda t: (t, 0, 0)),   # uniform noise
        ],
        out_specs=pl.BlockSpec((None, B, 4 * N), lambda t: (t, 0, 0)),
        **extra,
    )(h_t, w, b2, u)

    halt = out[..., 0 * N:1 * N]
    log_pi = out[..., 1 * N:2 * N]
    nlog_probs = out[..., 2 * N:3 * N]
    probs = out[..., 3 * N:4 * N]
    if squeeze_t:
        halt, log_pi, nlog_probs, probs = (x[0] for x in
                                           (halt, log_pi, nlog_probs, probs))
    return halt, log_pi, nlog_probs, probs


if __name__ == "__main__":
    T, B, input_size, output_size = 4, 8, 32, 16

    root = jax.random.PRNGKey(0)
    k_h, k_w, k_b, k_u = jax.random.split(root, 4)

    # nn.Linear-style init: U(-1/sqrt(in), 1/sqrt(in)).
    bound = 1.0 / (input_size ** 0.5)
    w = jax.random.uniform(k_w, (input_size, output_size), jnp.float32, -bound, bound)
    b = jax.random.uniform(k_b, (output_size,), jnp.float32, -bound, bound)
    h = jax.random.normal(k_h, (T, B, input_size), jnp.float32)

    halt, log_pi, nlog_probs, probs = controller_forward(h, w, b, k_u,
                                                         decade=2.0, eps=0.0)
    jax.block_until_ready((halt, log_pi, nlog_probs, probs))

    # Pure-JAX reference (same noise stream as the kernel).
    z_ref = jnp.einsum("tbk,kn->tbn", h, w, precision=lax.Precision.HIGHEST) + b
    probs_ref = jax.nn.sigmoid(-2.0 * z_ref)
    u_ref = jax.random.uniform(k_u, (T, B, output_size), jnp.float32)

    assert halt.shape == (T, B, output_size)
    assert log_pi.shape == (T, B, output_size)
    assert nlog_probs.shape == (T, B, output_size)
    assert probs.shape == (T, B, output_size)

    assert bool(jnp.all((halt == 0.0) | (halt == 1.0)))
    assert bool(jnp.all((probs > 0.0) & (probs < 1.0)))
    # probs matches sigmoid(-decade * fc(h)).
    assert bool(jnp.allclose(probs, probs_ref, atol=2e-2))
    # Internal consistency of the returned quantities.
    assert bool(jnp.allclose(nlog_probs, -jnp.log(probs), atol=1e-5))
    # halt is exactly the Bernoulli sample driven by the shared uniform noise.
    assert bool(jnp.array_equal(halt, (u_ref < probs).astype(jnp.float32)))
    # log_pi is the Bernoulli log_prob of the sample.
    log_pi_chk = jnp.where(halt > 0.5, jnp.log(probs), jnp.log1p(-probs))
    assert bool(jnp.allclose(log_pi, log_pi_chk, atol=1e-3))

    print("KERNEL_OK")
</pallas_src>

<mosaic_0001>
module attributes {stable_mosaic.version = 11 : i64} {
  func.func @_controller_kernel(%arg0: i32, %arg1: memref<1x8x32xf32, #tpu.memory_space<vmem>>, %arg2: memref<32x16xf32, #tpu.memory_space<vmem>>, %arg3: memref<1x16xf32, #tpu.memory_space<vmem>>, %arg4: memref<1x8x16xf32, #tpu.memory_space<vmem>>, %arg5: memref<1x8x64xf32, #tpu.memory_space<vmem>>) attributes {dimension_semantics = [#tpu.dimension_semantics<arbitrary>], iteration_bounds = array<i64: 4>, scalar_prefetch = 0 : i64, scratch_operands = 0 : i64, tpu.core_type = #tpu.core_type<tc>, window_params = [{transform_indices = @transform_0, window_bounds = array<i64: 1, 8, 32>}, {pipeline_mode = #tpu.pipeline_mode<synchronous>, transform_indices = @transform_1, window_bounds = array<i64: 32, 16>}, {pipeline_mode = #tpu.pipeline_mode<synchronous>, transform_indices = @transform_2, window_bounds = array<i64: 1, 16>}, {transform_indices = @transform_3, window_bounds = array<i64: 1, 8, 16>}, {transform_indices = @transform_4, window_bounds = array<i64: 1, 8, 64>}]} {
    %c0 = arith.constant 0 : index
    %c0_0 = arith.constant 0 : index
    %c0_1 = arith.constant 0 : index
    %0 = vector.load %arg1[%c0, %c0_0, %c0_1] : memref<1x8x32xf32, #tpu.memory_space<vmem>>, vector<1x8x32xf32>
    %1 = vector.shape_cast %0 : vector<1x8x32xf32> to vector<8x32xf32>
    %c0_2 = arith.constant 0 : index
    %c0_3 = arith.constant 0 : index
    %2 = vector.load %arg2[%c0_2, %c0_3] : memref<32x16xf32, #tpu.memory_space<vmem>>, vector<32x16xf32>
    %cst = arith.constant dense<0.000000e+00> : vector<8x16xf32>
    %3 = tpu.matmul %1, %2, %cst {dimension_numbers = #tpu.dot_dimension_numbers<[1], [0], [0], [1], [0, 0, 1, 1], [], []>} : vector<8x32xf32>, vector<32x16xf32>, vector<8x16xf32> -> vector<8x16xf32>
    %c0_4 = arith.constant 0 : index
    %c0_5 = arith.constant 0 : index
    %4 = vector.load %arg3[%c0_4, %c0_5] : memref<1x16xf32, #tpu.memory_space<vmem>>, vector<1x16xf32>
    %5 = vector.broadcast %4 : vector<1x16xf32> to vector<8x16xf32>
    %6 = arith.addf %3, %5 : vector<8x16xf32>
    %cst_6 = arith.constant -2.000000e+00 : f32
    %7 = vector.broadcast %cst_6 : f32 to vector<8x16xf32>
    %8 = arith.mulf %6, %7 : vector<8x16xf32>
    %cst_7 = arith.constant 0.000000e+00 : f32
    %9 = vector.broadcast %cst_7 : f32 to vector<8x16xf32>
    %10 = arith.subf %9, %8 : vector<8x16xf32>
    %11 = math.exp %10 : vector<8x16xf32>
    %cst_8 = arith.constant 1.000000e+00 : f32
    %12 = vector.broadcast %cst_8 : f32 to vector<8x16xf32>
    %13 = arith.addf %12, %11 : vector<8x16xf32>
    %cst_9 = arith.constant 1.000000e+00 : f32
    %14 = vector.broadcast %cst_9 : f32 to vector<8x16xf32>
    %15 = arith.divf %14, %13 : vector<8x16xf32>
    %16 = math.log1p %11 : vector<8x16xf32>
    %cst_10 = arith.constant 0.000000e+00 : f32
    %17 = vector.broadcast %cst_10 : f32 to vector<8x16xf32>
    %18 = arith.subf %17, %16 : vector<8x16xf32>
    %cst_11 = arith.constant 0.000000e+00 : f32
    %19 = vector.broadcast %cst_11 : f32 to vector<8x16xf32>
    %20 = arith.subf %19, %8 : vector<8x16xf32>
    %21 = arith.subf %20, %16 : vector<8x16xf32>
    %c0_12 = arith.constant 0 : index
    %c0_13 = arith.constant 0 : index
    %c0_14 = arith.constant 0 : index
    %22 = vector.load %arg4[%c0_12, %c0_13, %c0_14] : memref<1x8x16xf32, #tpu.memory_space<vmem>>, vector<1x8x16xf32>
    %23 = vector.shape_cast %22 : vector<1x8x16xf32> to vector<8x16xf32>
    %24 = arith.cmpf olt, %23, %15 : vector<8x16xf32>
    %25 = arith.extui %24 : vector<8x16xi1> to vector<8x16xi32>
    %26 = arith.sitofp %25 : vector<8x16xi32> to vector<8x16xf32>
    %27 = arith.select %24, %18, %21 : vector<8x16xi1>, vector<8x16xf32>
    %28 = tpu.concatenate %26, %27, %16, %15 in 1 : vector<8x16xf32>, vector<8x16xf32>, vector<8x16xf32>, vector<8x16xf32> -> vector<8x64xf32>
    %c0_15 = arith.constant 0 : index
    %c0_16 = arith.constant 0 : index
    %c0_17 = arith.constant 0 : index
    %29 = vector.load %arg5[%c0_15, %c0_16, %c0_17] : memref<1x8x64xf32, #tpu.memory_space<vmem>>, vector<1x8x64xf32>
    %30 = vector.shape_cast %29 : vector<1x8x64xf32> to vector<8x64xf32>
    %31 = vector.shape_cast %28 : vector<8x64xf32> to vector<1x8x64xf32>
    tpu.vector_store %arg5[%c0_15, %c0_16, %c0_17], %31 {strides = array<i32>} : memref<1x8x64xf32, #tpu.memory_space<vmem>>, vector<1x8x64xf32>,
    return
  }
  func.func @transform_0(%arg0: i32) -> (i32, i32, i32) {
    %c0_i32 = arith.constant 0 : i32
    %c0_i32_0 = arith.constant 0 : i32
    %c0_i32_1 = arith.constant 0 : i32
    return %arg0, %c0_i32, %c0_i32_0 : i32, i32, i32
  }
  func.func @transform_1(%arg0: i32) -> (i32, i32) {
    %c0_i32 = arith.constant 0 : i32
    %c0_i32_0 = arith.constant 0 : i32
    %c0_i32_1 = arith.constant 0 : i32
    return %c0_i32, %c0_i32_0 : i32, i32
  }
  func.func @transform_2(%arg0: i32) -> (i32, i32) {
    %c0_i32 = arith.constant 0 : i32
    %c0_i32_0 = arith.constant 0 : i32
    %c0_i32_1 = arith.constant 0 : i32
    return %c0_i32, %c0_i32_0 : i32, i32
  }
  func.func @transform_3(%arg0: i32) -> (i32, i32, i32) {
    %c0_i32 = arith.constant 0 : i32
    %c0_i32_0 = arith.constant 0 : i32
    %c0_i32_1 = arith.constant 0 : i32
    return %arg0, %c0_i32, %c0_i32_0 : i32, i32, i32
  }
  func.func @transform_4(%arg0: i32) -> (i32, i32, i32) {
    %c0_i32 = arith.constant 0 : i32
    %c0_i32_0 = arith.constant 0 : i32
    %c0_i32_1 = arith.constant 0 : i32
    return %arg0, %c0_i32, %c0_i32_0 : i32, i32, i32
  }
}

</mosaic_0001>

<llo_original>
// kernel: tpu_custom_call.1
$region0: #{tpu_custom_call.1}
  #allocation0 [shape = 'u32[]', space=smem, size = 0x4, offset = 0x4, fixed_abs, tag = 'smem constant byte address 0x4 - core index']
  #allocation1 [shape = 'u32[144,128]{1,0:T(1,128)}', space=vmem, size = 0x12000, scoped, tag = 'internal scratch']
  %s0 = inlined_call_operand.vmem [shape: f32[4,8,32], index: 0, kind: input, shape index: {}]
  %s1 = inlined_call_operand.vmem [shape: f32[32,16], index: 1, kind: input, shape index: {}]
  %s2 = inlined_call_operand.vmem [shape: f32[1,16], index: 2, kind: input, shape index: {}]
  %s3 = inlined_call_operand.hbm [shape: f32[4,8,16], index: 3, kind: input, shape index: {}]
  %s4 = inlined_call_operand.hbm [shape: f32[4,8,64], index: 4, kind: output, shape index: {}]
  %s5 = sld [smem:[#allocation0]]
  $region53: #{tpu_custom_call.1} parent=0
    _
  %s7 = ssub.s32 1, %s5
  %s8 = scalar_select 0, %s7, %s5
  $region1: #{tpu_custom_call.1} parent=0
    #allocation2 [shape = 'u8[8192]{0}', space=vmem, size = 0x2000, scoped, tag = 'input window, operand 3']
    #allocation3 [shape = 's32[2]{0}', space=sflag, size = 0x8, scoped, tag = 'scoped memory for tpu_custom_call.1']
    #allocation4 [shape = 's32[2]{0}', space=sflag, size = 0x8, scoped, tag = 'scoped memory for tpu_custom_call.1']
    #allocation5 [shape = 'u8[8192]{0}', space=vmem, size = 0x2000, scoped, tag = 'output window, operand 0']
    %9 = vsyncpa [#allocation3], 0
    %s10 = scalar_lea.sflag [#allocation3], 1
    %11 = vsyncpa %s10, 0
    %12 = vsyncpa [#allocation4], 0
    %s13 = scalar_lea.sflag [#allocation4], 1
    %14 = vsyncpa %s13, 0
    loop: start=0, step=1, limit=6
    $region2: #{tpu_custom_call.1} parent=1 // loop_pre_header
      _
    $region3: #{tpu_custom_call.1} parent=1 // loop_header
      %s16 = sphi 0, %s20
      %p17 = scmp.ge.s32.totalorder %s16, 6
      %s26 = sphi 0, %s28
      %s29 = sphi 0, %s26
      %s30 = sphi 0, %s29
      %s46 = sphi 0, %s30
      %s50 = sphi 0, %s50
      %s52 = sphi 0, %s50
      %s53 = sphi 0, %s52
      %s67 = sphi 0, %s53
      %s71 = sphi 0, %s71
      %s73 = sphi 0, %s71
      %s74 = sphi 0, %s73
      %s88 = sphi 0, %s74
      %s94 = sphi 0, %s96
      %s97 = sphi 0, %s94
      %s98 = sphi 0, %s97
      %s114 = sphi 0, %s98
      %s120 = sphi 0, %s122
      %s123 = sphi 0, %s120
      %s124 = sphi 0, %s123
      %s140 = sphi 0, %s124
    $region4: #{tpu_custom_call.1} parent=1 // loop_header_branch
      %19 = sbr.rel (%p17) target = $region8
    $region5: #{tpu_custom_call.1} parent=1 // loop_body
      %s21 = ssub.s32 %s16, 1
      %s22 = ssub.s32 %s16, 2
      %s23 = sadd.s32 %s16, 1
      %s24 = ssub.s32 %s16, %s23
      %p25 = scmp.eq.s32.totalorder %s24, 0
      %s27 = sadd.s32 %s26, 1
      %s28 = scalar_select %p25, %s26, %s27
      %p31 = pneg %p25
      %p32 = scmp.eq.s32.totalorder %s16, 3
      %p33 = por %p31, %p32
      %p34 = scmp.ne.s32.totalorder %s26, %s29
      %p35 = scmp.eq.s32.totalorder %s16, 0
      %p36 = por %p34, %p35
      %p37 = scmp.ne.s32.totalorder %s26, %s29
      %p38 = scmp.eq.s32.totalorder %s21, 3
      %p39 = por %p37, %p38
      %p40 = scmp.ne.s32.totalorder %s29, %s30
      %p41 = scmp.eq.s32.totalorder %s21, 0
      %p42 = por %p40, %p41
      %p43 = scmp.ne.s32.totalorder %s29, %s30
      %p44 = scmp.eq.s32.totalorder %s22, 3
      %p45 = por %p43, %p44
      %p47 = scmp.ne.s32.totalorder %s30, %s46
      %p48 = scmp.eq.s32.totalorder %s22, 0
      %p49 = por %p47, %p48
      %s51 = sadd.s32 %s50, 1
      %p54 = scmp.eq.s32.totalorder %s16, 3
      %p55 = scmp.ne.s32.totalorder %s50, %s52
      %p56 = scmp.eq.s32.totalorder %s16, 0
      %p57 = por %p55, %p56
      %p58 = scmp.ne.s32.totalorder %s50, %s52
      %p59 = scmp.eq.s32.totalorder %s21, 3
      %p60 = por %p58, %p59
      %p61 = scmp.ne.s32.totalorder %s52, %s53
      %p62 = scmp.eq.s32.totalorder %s21, 0
      %p63 = por %p61, %p62
      %p64 = scmp.ne.s32.totalorder %s52, %s53
      %p65 = scmp.eq.s32.totalorder %s22, 3
      %p66 = por %p64, %p65
      %p68 = scmp.ne.s32.totalorder %s53, %s67
      %p69 = scmp.eq.s32.totalorder %s22, 0
      %p70 = por %p68, %p69
      %s72 = sadd.s32 %s71, 1
      %p75 = scmp.eq.s32.totalorder %s16, 3
      %p76 = scmp.ne.s32.totalorder %s71, %s73
      %p77 = scmp.eq.s32.totalorder %s16, 0
      %p78 = por %p76, %p77
      %p79 = scmp.ne.s32.totalorder %s71, %s73
      %p80 = scmp.eq.s32.totalorder %s21, 3
      %p81 = por %p79, %p80
      %p82 = scmp.ne.s32.totalorder %s73, %s74
      %p83 = scmp.eq.s32.totalorder %s21, 0
      %p84 = por %p82, %p83
      %p85 = scmp.ne.s32.totalorder %s73, %s74
      %p86 = scmp.eq.s32.totalorder %s22, 3
      %p87 = por %p85, %p86
      %p89 = scmp.ne.s32.totalorder %s74, %s88
      %p90 = scmp.eq.s32.totalorder %s22, 0
      %p91 = por %p89, %p90
      %s92 = ssub.s32 %s16, %s23
      %p93 = scmp.eq.s32.totalorder %s92, 0
      %s95 = sadd.s32 %s94, 1
      %s96 = scalar_select %p93, %s94, %s95
      %p99 = pneg %p93
      %p100 = scmp.eq.s32.totalorder %s16, 3
      %p101 = por %p99, %p100
      %p102 = scmp.ne.s32.totalorder %s94, %s97
      %p103 = scmp.eq.s32.totalorder %s16, 0
      %p104 = por %p102, %p103
      %p105 = scmp.ne.s32.totalorder %s94, %s97
      %p106 = scmp.eq.s32.totalorder %s21, 3
      %p107 = por %p105, %p106
      %p108 = scmp.ne.s32.totalorder %s97, %s98
      %p109 = scmp.eq.s32.totalorder %s21, 0
      %p110 = por %p108, %p109
      %p111 = scmp.ne.s32.totalorder %s97, %s98
      %p112 = scmp.eq.s32.totalorder %s22, 3
      %p113 = por %p111, %p112
      %p115 = scmp.ne.s32.totalorder %s98, %s114
      %p116 = scmp.eq.s32.totalorder %s22, 0
      %p117 = por %p115, %p116
      %s118 = ssub.s32 %s16, %s23
      %p119 = scmp.eq.s32.totalorder %s118, 0
      %s121 = sadd.s32 %s120, 1
      %s122 = scalar_select %p119, %s120, %s121
      %p125 = pneg %p119
      %p126 = scmp.eq.s32.totalorder %s16, 3
      %p127 = por %p125, %p126
      %p128 = scmp.ne.s32.totalorder %s120, %s123
      %p129 = scmp.eq.s32.totalorder %s16, 0
      %p130 = por %p128, %p129
      %p131 = scmp.ne.s32.totalorder %s120, %s123
      %p132 = scmp.eq.s32.totalorder %s21, 3
      %p133 = por %p131, %p132
      %p134 = scmp.ne.s32.totalorder %s123, %s124
      %p135 = scmp.eq.s32.totalorder %s21, 0
      %p136 = por %p134, %p135
      %p137 = scmp.ne.s32.totalorder %s123, %s124
      %p138 = scmp.eq.s32.totalorder %s22, 3
      %p139 = por %p137, %p138
      %p141 = scmp.ne.s32.totalorder %s124, %s140
      %p142 = scmp.eq.s32.totalorder %s22, 0
      %p143 = por %p141, %p142
      %p144 = scmp.le.s32.totalorder 1, %s16
      %p145 = scmp.lt.s32.totalorder %s16, 5
      %p146 = pnand %p144, %p145
      %p147 = pneg %p146
      // Predicated region
      $region9: #{tpu_custom_call.1} parent=5 // pred_check
        _
      $region10: #{tpu_custom_call.1} parent=5 // pred_check_branch
        %149 = sbr.rel (%p146) target = $region12
      $region11: #{tpu_custom_call.1} parent=5 // pred_region
        %s150 = ssub.s32 %s16, 1
        // Predicated region
        $region13: #{tpu_custom_call.1} parent=11 // pred_check
          %p151 = pneg %p63
        $region14: #{tpu_custom_call.1} parent=11 // pred_check_branch
          %153 = sbr.rel (%p151) target = $region16
        $region15: #{tpu_custom_call.1} parent=11 // pred_region
          _
        $region16: #{tpu_custom_call.1} parent=11 // pred_fallthru
          _
        // Predicated region
        $region17: #{tpu_custom_call.1} parent=11 // pred_check
          %p154 = pneg %p84
        $region18: #{tpu_custom_call.1} parent=11 // pred_check_branch
          %156 = sbr.rel (%p154) target = $region20
        $region19: #{tpu_custom_call.1} parent=11 // pred_region
          _
        $region20: #{tpu_custom_call.1} parent=11 // pred_fallthru
          _
      $region12: #{tpu_custom_call.1} parent=5 // pred_fallthru
        _
      %p157 = scmp.lt.s32.totalorder %s16, 4
      // Predicated region
      $region21: #{tpu_custom_call.1} parent=5 // pred_check
        %p158 = pneg %p157
      $region22: #{tpu_custom_call.1} parent=5 // pred_check_branch
        %160 = sbr.rel (%p158) target = $region24
      $region23: #{tpu_custom_call.1} parent=5 // pred_region
        // Predicated region
        $region25: #{tpu_custom_call.1} parent=23 // pred_check
          %p161 = pneg %p36
        $region26: #{tpu_custom_call.1} parent=23 // pred_check_branch
          %163 = sbr.rel (%p161) target = $region28
        $region27: #{tpu_custom_call.1} parent=23 // pred_region
          %p164 = scmp.lt.s32.totalorder %s16, 3
          %s165 = scalar_select %p164, %s16, 3
          %s166 = smul.addr %s165, 8
          %s167 = scalar_lea.vmem %s0, %s166
        $region28: #{tpu_custom_call.1} parent=23 // pred_fallthru
          _
        // Predicated region
        $region29: #{tpu_custom_call.1} parent=23 // pred_check
          %p168 = pneg %p104
        $region30: #{tpu_custom_call.1} parent=23 // pred_check_branch
          %170 = sbr.rel (%p168) target = $region32
        $region31: #{tpu_custom_call.1} parent=23 // pred_region
          %s171 = sand.u32 %s94, 1
          %s172 = scalar_lea.sflag [#allocation3], %s171
          %s173 = sand.u32 %s94, 1
          %s174 = smul.addr %s173, 8
          %s175 = scalar_lea.vmem [#allocation2], %s174
          %s177 = ssub.s32 128, 128
          %178 = vsyncadd %s172, %s177
          %s179 = smul.addr %s16, 128
          %s180 = scalar_lea.hbm %s3, %s179
          %s182 = sshll.u32 %s175, 4
          %s183 = int_to_ptr.vmem [resolvable:$true] %s182
          %185 = dma.hbm_to_vmem [thread:$0]  %s180, 128, %s183, %s172
        $region32: #{tpu_custom_call.1} parent=23 // pred_fallthru
          _
      $region24: #{tpu_custom_call.1} parent=5 // pred_fallthru
        _
      %p186 = scmp.le.s32.totalorder 1, %s16
      %p187 = scmp.lt.s32.totalorder %s16, 5
      %p188 = pnand %p186, %p187
      %p189 = pneg %p188
      // Predicated region
      $region33: #{tpu_custom_call.1} parent=5 // pred_check
        _
      $region34: #{tpu_custom_call.1} parent=5 // pred_check_branch
        %191 = sbr.rel (%p188) target = $region36
      $region35: #{tpu_custom_call.1} parent=5 // pred_region
        %s192 = ssub.s32 %s16, 1
        %s193 = sand.u32 %s97, 1
        %s194 = scalar_lea.sflag [#allocation3], %s193
        %s195 = sand.u32 %s97, 1
        %s196 = smul.addr %s195, 8
        %s197 = scalar_lea.vmem [#allocation2], %s196
        // Predicated region
        $region37: #{tpu_custom_call.1} parent=35 // pred_check
          %p198 = pneg %p110
        $region38: #{tpu_custom_call.1} parent=35 // pred_check_branch
          %200 = sbr.rel (%p198) target = $region40
        $region39: #{tpu_custom_call.1} parent=35 // pred_region
          %201 = dma.done %s194, 128
        $region40: #{tpu_custom_call.1} parent=35 // pred_fallthru
          _
        %p202 = scmp.lt.s32.totalorder %s21, 3
        %s203 = scalar_select %p202, %s21, 3
        %s204 = smul.addr %s203, 8
        %s205 = scalar_lea.vmem %s0, %s204
        %p206 = pneg %p42
        %p207 = pneg %p39
        %p208 = pneg %p63
        %p209 = pneg %p60
        %p210 = pneg %p84
        %p211 = pneg %p81
        %s212 = sand.u32 %s97, 1
        %s213 = scalar_lea.sflag [#allocation3], %s212
        %s214 = sand.u32 %s97, 1
        %s215 = smul.addr %s214, 8
        %s216 = scalar_lea.vmem [#allocation2], %s215
        %p217 = pneg %p110
        %p218 = pneg %p107
        %p219 = pneg %p136
        %p220 = pneg %p133
        %s221 = sand.u32 %s123, 1
        %s222 = scalar_lea.sflag [#allocation4], %s221
        %s223 = sand.u32 %s123, 1
        %s224 = smul.addr %s223, 8
        %s225 = scalar_lea.vmem [#allocation5], %s224
        %p226 = scmp.lt.s32.totalorder %s21, 3
        %s227 = scalar_select %p226, %s21, 3
        %s228 = smul.addr %s227, 8
        %s229 = scalar_lea.vmem %s0, %s228
        %v230 = vld [vmem:[%s229] sm:$0xff]
        %v231 = vld [vmem:[%s1] sm:$0xff]
        %v232 = vld [vmem:[%s1 + $0x8] sm:$0xff]
        %v233 = vld [vmem:[%s1 + $0x10] sm:$0xff]
        %v234 = vld [vmem:[%s1 + $0x18] sm:$0xff]
        %v235 = vld [vmem:[%s2] sm:$0x1]
        %v237 = vlaneseq
        %v238 = vshrl.u32 %v237, 7
        %v239 = vsub.s32 0, %v238
        %v240 = vrot.slane %v235, %v239
        %vm242 = vcmask 261120
        %v244 = vsel %vm242, %v230, 0
        %246 = vmatprep.subr.mxu0 0.0
        %247 = vmatpush1.msra.mxu0 %v231
        %248 = vmatprep.subr.mxu0 0.0
        %249 = vmatpush1.msra.mxu0 %v232
        %250 = vmatprep.subr.mxu0 0.0
        %251 = vmatpush1.msra.mxu0 %v233
        %252 = vmatprep.subr.mxu0 0.0
        %253 = vmatpush1.msra.mxu0 %v234
        %254 = vmatprep.subr.mxu0 0.0
        %255 = vmatpush1.msra.mxu0 0.0
        %256 = vmatprep.subr.mxu0 0.0
        %257 = vmatpush1.msra.mxu0 0.0
        %258 = vmatprep.subr.mxu0 0.0
        %259 = vmatpush1.msra.mxu0 0.0
        %260 = vmatprep.subr.mxu0 0.0
        %261 = vmatpush1.msra.mxu0 0.0
        %262 = vmatprep.subr.mxu0 0.0
        %263 = vmatpush1.msra.mxu0 0.0
        %264 = vmatprep.subr.mxu0 0.0
        %265 = vmatpush1.msra.mxu0 0.0
        %266 = vmatprep.subr.mxu0 0.0
        %267 = vmatpush1.msra.mxu0 0.0
        %268 = vmatprep.subr.mxu0 0.0
        %269 = vmatpush1.msra.mxu0 0.0
        %270 = vmatprep.subr.mxu0 0.0
        %271 = vmatpush1.msra.mxu0 0.0
        %272 = vmatprep.subr.mxu0 0.0
        %273 = vmatpush1.msra.mxu0 0.0
        %274 = vmatprep.subr.mxu0 0.0
        %275 = vmatpush1.msra.mxu0 0.0
        %276 = vmatprep.subr.mxu0 0.0
        %277 = vmatpush1.msra.mxu0 0.0
        %278 = vmatprep.subr.mxu0 0.0
        %279 = vmatpush1.msra.mxu0 0.0
        %280 = vmatprep.subr.mxu0 0.0
        %281 = vmatpush1.msra.mxu0 0.0
        %282 = vmatprep.subr.mxu0 0.0
        %283 = vmatpush1.msra.mxu0 0.0
        %284 = vmatprep.subr.mxu0 0.0
        %285 = vmatpush1.msra.mxu0 0.0
        %286 = vmatprep.subr.mxu0 0.0
        %287 = vmatpush1.msra.mxu0 0.0
        %288 = vmatprep.subr.mxu0 0.0
        %289 = vmatpush1.msra.mxu0 0.0
        %290 = vmatprep.subr.mxu0 0.0
        %291 = vmatpush1.msra.mxu0 0.0
        %292 = vmatprep.subr.mxu0 0.0
        %293 = vmatpush1.msra.mxu0 0.0
        %294 = vmatprep.subr.mxu0 0.0
        %295 = vmatpush1.msra.mxu0 0.0
        %296 = vmatprep.subr.mxu0 0.0
        %297 = vmatpush1.msra.mxu0 0.0
        %298 = vmatprep.subr.mxu0 0.0
        %299 = vmatpush1.msra.mxu0 0.0
        %300 = vmatprep.subr.mxu0 0.0
        %301 = vmatpush1.msra.mxu0 0.0
        %302 = vmatprep.subr.mxu0 0.0
        %303 = vmatpush1.msra.mxu0 0.0
        %304 = vmatprep.subr.mxu0 0.0
        %305 = vmatpush1.msra.mxu0 0.0
        %306 = vmatprep.subr.mxu0 0.0
        %307 = vmatpush1.msra.mxu0 0.0
        %308 = vmatprep.subr.mxu0 0.0
        %309 = vmatpush1.msra.mxu0 0.0
        %310 = vmatprep.mubr.f32.mxu0 0.0
        %311 = vmatmul.mubr.f32.gmra.mrb[0].mxu0 %v244
        %v312 = vpop.f32.mrb[0].mxu0
        %v313 = vadd.f32 %v240, %v312
        %v314 = vpop.f32.mrb[0].mxu0
        %315 = vdwg.mxu0
        %v316 = vmul.f32 %v313, -2.0
        %v317 = vsub.f32 0.0, %v316
        %v318 = vmul.f32 %v317, 1.442695
        %v319 = vpow.pop %v318
        %v320 = vadd.f32 %v319, 1.0
        %v321 = vrcp.pop %v320
        %v322 = vmul.f32 1.0, %v321
        %v323 = vadd.f32 %v319, 1.0
        %v324 = vlog2.pop %v323
        %v325 = vmul.f32 %v324, 0.6931472
        %v326 = vmul.f32 -0.5, %v319
        %v327 = vadd.f32 %v326, 1.0
        %v328 = vmul.f32 %v327, %v319
        %v329 = vand.u32 2147483647, %v319
        %vm330 = vcmp.lt.f32.partialorder %v329, 0.0004427343
        %v331 = vsel %vm330, %v328, %v325
        %v332 = vsub.f32 0.0, %v331
        %v333 = vsub.f32 %v317, %v331
        %v334 = vld [vmem:[%s197] sm:$0xff]
        %vm335 = vcmp.lt.f32.partialorder %v334, %v322
        %v336 = vsel %vm335, 1, 0
        %v337 = vcvt.s32.f32 %v336
        %v338 = vsel %vm335, %v332, %v333
        %340 = vrot.lane.b32.xlu0 %v338, 16
        %v341 = vpop.permute.xlu0 %340
        %344 = vrot.lane.b32.xlu0 %v331, 32
        %v345 = vpop.permute.xlu0 %344
        %348 = vrot.lane.b32.xlu0 %v322, 48
        %v349 = vpop.permute.xlu0 %348
        %vm351 = vcmask 130048
        %v352 = vsel %vm351, %v337, %v341
        %v353 = vsel %vm242, %v352, %v345
        %vm354 = vcmask 392192
        %v355 = vsel %vm354, %v353, %v349
        %vm356 = vcmask 523264
        %357 = vst.msk [vmem:[%s225] sm:$0xff] %vm356, %v355
        %s358 = sand.u32 %s123, 1
        %s359 = scalar_lea.sflag [#allocation4], %s358
        %s360 = sand.u32 %s123, 1
        %s361 = smul.addr %s360, 8
        %s362 = scalar_lea.vmem [#allocation5], %s361
        // Predicated region
        $region41: #{tpu_custom_call.1} parent=35 // pred_check
          %p363 = pneg %p133
        $region42: #{tpu_custom_call.1} parent=35 // pred_check_branch
          %365 = sbr.rel (%p363) target = $region44
        $region43: #{tpu_custom_call.1} parent=35 // pred_region
          %s367 = ssub.s32 128, 128
          %368 = vsyncadd %s359, %s367
          %s369 = smul.addr %s21, 128
          %s370 = scalar_lea.hbm %s4, %s369
          %s372 = sshll.u32 %s362, 4
          %s373 = int_to_ptr.vmem [resolvable:$true] %s372
          %375 = dma.vmem_to_hbm [thread:$0]  %s373, 128, %s370, %s359
        $region44: #{tpu_custom_call.1} parent=35 // pred_fallthru
          _
      $region36: #{tpu_custom_call.1} parent=5 // pred_fallthru
        _
      %p376 = scmp.le.s32.totalorder 2, %s16
      // Predicated region
      $region45: #{tpu_custom_call.1} parent=5 // pred_check
        %p377 = pneg %p376
      $region46: #{tpu_custom_call.1} parent=5 // pred_check_branch
        %379 = sbr.rel (%p377) target = $region48
      $region47: #{tpu_custom_call.1} parent=5 // pred_region
        %s380 = ssub.s32 %s16, 2
        // Predicated region
        $region49: #{tpu_custom_call.1} parent=47 // pred_check
          %p381 = pneg %p139
        $region50: #{tpu_custom_call.1} parent=47 // pred_check_branch
          %383 = sbr.rel (%p381) target = $region52
        $region51: #{tpu_custom_call.1} parent=47 // pred_region
          %s384 = sand.u32 %s124, 1
          %s385 = scalar_lea.sflag [#allocation4], %s384
          %s386 = sand.u32 %s124, 1
          %s387 = smul.addr %s386, 8
          %s388 = scalar_lea.vmem [#allocation5], %s387
          %389 = dma.done %s385, 128
        $region52: #{tpu_custom_call.1} parent=47 // pred_fallthru
          _
      $region48: #{tpu_custom_call.1} parent=5 // pred_fallthru
        _
    $region6: #{tpu_custom_call.1} parent=1 // loop_footer
      %s20 = sadd.s32 1, %s16
    $region7: #{tpu_custom_call.1} parent=1 // loop_footer_branch
      %15 = sbr.rel target = $region3
    $region8: #{tpu_custom_call.1} parent=1 // loop_exit
      _
    %390 = vsyncpa [#allocation3], 1
    %s391 = scalar_lea.sflag [#allocation3], 1
    %392 = vsyncpa %s391, 1
    %393 = vsyncpa [#allocation4], 1
    %s394 = scalar_lea.sflag [#allocation4], 1
    %395 = vsyncpa %s394, 1

</llo_original>
